<compile_context>
chip_gen: v7x
topology: tpu7x:2x2x1
jax: 0.10.0
libtpu: 0.0.40
codegen_flags: <defaults>
</compile_context>

<pallas_src>
import jax
import jax.numpy as jnp
from jax.experimental import pallas as pl
from jax.experimental.pallas import tpu as pltpu


def _round_up(x: int, m: int) -> int:
    return ((x + m - 1) // m) * m


def _make_mlp_kernel(num_layers: int, use_bf16_matmul: bool):
    """Kernel applying `num_layers` linears with tanh in between (none after
    the last).  refs = (x_ref, w0, b0, w1, b1, ..., o_ref) with
      x_ref : (in_dim, tile)   feature-major activation tile (batch on lanes)
      w_l   : (d_out, d_in)    PyTorch nn.Linear weight layout
      b_l   : (d_out, 1)
      o_ref : (out_dim, tile)
    """
    mm_dtype = jnp.bfloat16 if use_bf16_matmul else jnp.float32

    def kernel(*refs):
        x_ref = refs[0]
        o_ref = refs[-1]
        param_refs = refs[1:-1]

        h = x_ref[...].astype(jnp.float32)
        for li in range(num_layers):
            w = param_refs[2 * li][...]
            b = param_refs[2 * li + 1][...].astype(jnp.float32)
            # MXU matmul: (d_out, d_in) @ (d_in, tile) -> (d_out, tile).
            # N = tile (multiple of 128) keeps lanes full; f32 accumulation.
            h = jnp.dot(w.astype(mm_dtype), h.astype(mm_dtype),
                        preferred_element_type=jnp.float32) + b
            if li < num_layers - 1:
                h = jnp.tanh(h)  # EUP slot: concurrent with MXU/stores, ~free
        o_ref[...] = h.astype(o_ref.dtype)

    return kernel


def _choose_tile(batch: int, max_tile: int):
    """Pick (tile, padded_batch).  Lane axis padded to a multiple of 128; use
    the full (padded) batch as one big tile when small, otherwise split into
    >=2 large tiles so v7x's two TensorCores both get a grid step."""
    batch128 = _round_up(batch, 128)
    if batch128 >= 1024:
        tile = min(max_tile, _round_up(pl.cdiv(batch128, 2), 128))
    else:
        tile = batch128
    return tile, _round_up(batch, tile)


def interpolation_net_forward(x, params, *, max_tile: int = 2048,
                              use_bf16_matmul: bool = False):
    """Fused forward pass.

    x:      (batch, in_dim) float32   (same layout PyTorch hands to nn.Linear)
    params: list of (W, b) with W: (d_out, d_in)  [PyTorch layout], b: (d_out, 1)
    returns (batch, 1) float32.
    """
    batch, in_dim = x.shape
    num_layers = len(params)
    out_dim = params[-1][0].shape[0]  # == 1

    tile, batch_p = _choose_tile(batch, max_tile)
    grid = batch_p // tile

    # Feature-major input: batch on the lane (last) axis, zero-padded rows are
    # sliced off at the end (zeros stay finite through linear+tanh).
    x_fm = jnp.zeros((in_dim, batch_p), x.dtype).at[:, :batch].set(x.T)

    kernel = _make_mlp_kernel(num_layers, use_bf16_matmul)

    # x tiled along the batch/lane axis; params are tiny, block-index-constant
    # (so not re-DMA'd per step) and mapped in full.
    in_specs = [pl.BlockSpec((in_dim, tile), lambda i: (0, i))]
    flat_params = []
    for (w, b) in params:
        in_specs.append(pl.BlockSpec(w.shape, lambda i: (0, 0)))
        in_specs.append(pl.BlockSpec(b.shape, lambda i: (0, 0)))
        flat_params.extend([w, b])
    out_specs = pl.BlockSpec((out_dim, tile), lambda i: (0, i))

    # VMEM budget: double-buffered x/out blocks + (tiny) params + a few f32
    # activation slabs.  Only raise the scoped limit when we exceed the
    # smallest default (16 MiB on v5e); cap at 48 MiB so the same value is
    # valid on v7x's 64 MiB physical VMEM.
    widths = [in_dim] + [w.shape[0] for (w, _) in params]
    est = (2 * 4 * in_dim * tile + 2 * 4 * out_dim * tile
           + 2 * sum(4 * (w.size + b.size) for (w, b) in params)
           + 4 * 4 * tile * max(widths))
    ckwargs = dict(dimension_semantics=("parallel",))
    if est > 12 * 2**20:
        ckwargs["vmem_limit_bytes"] = int(min(48 * 2**20, 2 * est))

    fn = pl.pallas_call(
        kernel,
        out_shape=jax.ShapeDtypeStruct((out_dim, batch_p), jnp.float32),
        grid_spec=pltpu.PrefetchScalarGridSpec(
            num_scalar_prefetch=0,
            grid=(grid,),
            in_specs=in_specs,
            out_specs=out_specs,
        ),
        compiler_params=pltpu.CompilerParams(**ckwargs),
    )
    out_fm = fn(x_fm, *flat_params)           # (1, batch_p), lane-dense store
    return out_fm[:, :batch].T                # (batch, 1)


def init_params(key, in_dim, hidden_dims):
    """PyTorch nn.Linear-style init: U(-1/sqrt(fan_in), 1/sqrt(fan_in)).
    W uses PyTorch's (out_features, in_features) layout; b is (out, 1)."""
    dims = [in_dim] + list(hidden_dims) + [1]
    params = []
    for d_in, d_out in zip(dims[:-1], dims[1:]):
        key, kw, kb = jax.random.split(key, 3)
        bound = 1.0 / float(d_in) ** 0.5
        w = jax.random.uniform(kw, (d_out, d_in), jnp.float32, -bound, bound)
        b = jax.random.uniform(kb, (d_out, 1), jnp.float32, -bound, bound)
        params.append((w, b))
    return params


def reference_forward(x, params):
    h = x
    for li, (w, b) in enumerate(params):
        h = h @ w.T + b[:, 0]
        if li < len(params) - 1:
            h = jnp.tanh(h)
    return h


if __name__ == "__main__":
    key = jax.random.PRNGKey(0)
    in_dim, hidden_dims = 8, [32, 16]

    key, kp = jax.random.split(key)
    params = init_params(kp, in_dim, hidden_dims)

    # Small aligned batch + a ragged batch (exercises padding + slicing path).
    for batch in (16, 300):
        key, kx = jax.random.split(key)
        x = jax.random.normal(kx, (batch, in_dim), jnp.float32)

        out = jax.block_until_ready(interpolation_net_forward(x, params))
        ref = reference_forward(x, params)

        assert out.shape == (batch, 1), out.shape
        err = float(jnp.max(jnp.abs(out - ref)))
        assert err < 1e-5, err

    print("KERNEL_OK")
</pallas_src>

<mosaic_0001>
module attributes {stable_mosaic.version = 11 : i64} {
  func.func @kernel(%arg0: i32, %arg1: memref<8x128xf32, #tpu.memory_space<vmem>>, %arg2: memref<32x8xf32, #tpu.memory_space<vmem>>, %arg3: memref<32x1xf32, #tpu.memory_space<vmem>>, %arg4: memref<16x32xf32, #tpu.memory_space<vmem>>, %arg5: memref<16x1xf32, #tpu.memory_space<vmem>>, %arg6: memref<1x16xf32, #tpu.memory_space<vmem>>, %arg7: memref<1x1xf32, #tpu.memory_space<vmem>>, %arg8: memref<1x128xf32, #tpu.memory_space<vmem>>) attributes {dimension_semantics = [#tpu.dimension_semantics<parallel>], iteration_bounds = array<i64: 1>, scalar_prefetch = 0 : i64, scratch_operands = 0 : i64, tpu.core_type = #tpu.core_type<tc>, window_params = [{transform_indices = @transform_0, window_bounds = array<i64: 8, 128>}, {pipeline_mode = #tpu.pipeline_mode<synchronous>, transform_indices = @transform_1, window_bounds = array<i64: 32, 8>}, {pipeline_mode = #tpu.pipeline_mode<synchronous>, transform_indices = @transform_2, window_bounds = array<i64: 32, 1>}, {pipeline_mode = #tpu.pipeline_mode<synchronous>, transform_indices = @transform_3, window_bounds = array<i64: 16, 32>}, {pipeline_mode = #tpu.pipeline_mode<synchronous>, transform_indices = @transform_4, window_bounds = array<i64: 16, 1>}, {pipeline_mode = #tpu.pipeline_mode<synchronous>, transform_indices = @transform_5, window_bounds = array<i64: 1, 16>}, {pipeline_mode = #tpu.pipeline_mode<synchronous>, transform_indices = @transform_6, window_bounds = array<i64: 1, 1>}, {transform_indices = @transform_7, window_bounds = array<i64: 1, 128>}]} {
    %c0 = arith.constant 0 : index
    %c0_0 = arith.constant 0 : index
    %0 = vector.load %arg1[%c0, %c0_0] : memref<8x128xf32, #tpu.memory_space<vmem>>, vector<8x128xf32>
    %c0_1 = arith.constant 0 : index
    %c0_2 = arith.constant 0 : index
    %1 = vector.load %arg2[%c0_1, %c0_2] : memref<32x8xf32, #tpu.memory_space<vmem>>, vector<32x8xf32>
    %c0_3 = arith.constant 0 : index
    %c0_4 = arith.constant 0 : index
    %2 = vector.load %arg3[%c0_3, %c0_4] : memref<32x1xf32, #tpu.memory_space<vmem>>, vector<32x1xf32>
    %cst = arith.constant dense<0.000000e+00> : vector<32x128xf32>
    %3 = tpu.matmul %1, %0, %cst {dimension_numbers = #tpu.dot_dimension_numbers<[1], [0], [0], [1], [0, 0, 1, 1], [], []>} : vector<32x8xf32>, vector<8x128xf32>, vector<32x128xf32> -> vector<32x128xf32>
    %4 = vector.broadcast %2 : vector<32x1xf32> to vector<32x128xf32>
    %5 = arith.addf %3, %4 : vector<32x128xf32>
    %6 = math.tanh %5 : vector<32x128xf32>
    %c0_5 = arith.constant 0 : index
    %c0_6 = arith.constant 0 : index
    %7 = vector.load %arg4[%c0_5, %c0_6] : memref<16x32xf32, #tpu.memory_space<vmem>>, vector<16x32xf32>
    %c0_7 = arith.constant 0 : index
    %c0_8 = arith.constant 0 : index
    %8 = vector.load %arg5[%c0_7, %c0_8] : memref<16x1xf32, #tpu.memory_space<vmem>>, vector<16x1xf32>
    %cst_9 = arith.constant dense<0.000000e+00> : vector<16x128xf32>
    %9 = tpu.matmul %7, %6, %cst_9 {dimension_numbers = #tpu.dot_dimension_numbers<[1], [0], [0], [1], [0, 0, 1, 1], [], []>} : vector<16x32xf32>, vector<32x128xf32>, vector<16x128xf32> -> vector<16x128xf32>
    %10 = vector.broadcast %8 : vector<16x1xf32> to vector<16x128xf32>
    %11 = arith.addf %9, %10 : vector<16x128xf32>
    %12 = math.tanh %11 : vector<16x128xf32>
    %c0_10 = arith.constant 0 : index
    %c0_11 = arith.constant 0 : index
    %13 = vector.load %arg6[%c0_10, %c0_11] : memref<1x16xf32, #tpu.memory_space<vmem>>, vector<1x16xf32>
    %c0_12 = arith.constant 0 : index
    %c0_13 = arith.constant 0 : index
    %14 = vector.load %arg7[%c0_12, %c0_13] : memref<1x1xf32, #tpu.memory_space<vmem>>, vector<1x1xf32>
    %cst_14 = arith.constant dense<0.000000e+00> : vector<1x128xf32>
    %15 = tpu.matmul %13, %12, %cst_14 {dimension_numbers = #tpu.dot_dimension_numbers<[1], [0], [0], [1], [0, 0, 1, 1], [], []>} : vector<1x16xf32>, vector<16x128xf32>, vector<1x128xf32> -> vector<1x128xf32>
    %16 = vector.broadcast %14 : vector<1x1xf32> to vector<1x128xf32>
    %17 = arith.addf %15, %16 : vector<1x128xf32>
    %c0_15 = arith.constant 0 : index
    %c0_16 = arith.constant 0 : index
    %18 = vector.load %arg8[%c0_15, %c0_16] : memref<1x128xf32, #tpu.memory_space<vmem>>, vector<1x128xf32>
    tpu.vector_store %arg8[%c0_15, %c0_16], %17 {strides = array<i32>} : memref<1x128xf32, #tpu.memory_space<vmem>>, vector<1x128xf32>,
    return
  }
  func.func @transform_0(%arg0: i32) -> (i32, i32) {
    %c0_i32 = arith.constant 0 : i32
    %c0_i32_0 = arith.constant 0 : i32
    return %c0_i32, %arg0 : i32, i32
  }
  func.func @transform_1(%arg0: i32) -> (i32, i32) {
    %c0_i32 = arith.constant 0 : i32
    %c0_i32_0 = arith.constant 0 : i32
    %c0_i32_1 = arith.constant 0 : i32
    return %c0_i32, %c0_i32_0 : i32, i32
  }
  func.func @transform_2(%arg0: i32) -> (i32, i32) {
    %c0_i32 = arith.constant 0 : i32
    %c0_i32_0 = arith.constant 0 : i32
    %c0_i32_1 = arith.constant 0 : i32
    return %c0_i32, %c0_i32_0 : i32, i32
  }
  func.func @transform_3(%arg0: i32) -> (i32, i32) {
    %c0_i32 = arith.constant 0 : i32
    %c0_i32_0 = arith.constant 0 : i32
    %c0_i32_1 = arith.constant 0 : i32
    return %c0_i32, %c0_i32_0 : i32, i32
  }
  func.func @transform_4(%arg0: i32) -> (i32, i32) {
    %c0_i32 = arith.constant 0 : i32
    %c0_i32_0 = arith.constant 0 : i32
    %c0_i32_1 = arith.constant 0 : i32
    return %c0_i32, %c0_i32_0 : i32, i32
  }
  func.func @transform_5(%arg0: i32) -> (i32, i32) {
    %c0_i32 = arith.constant 0 : i32
    %c0_i32_0 = arith.constant 0 : i32
    %c0_i32_1 = arith.constant 0 : i32
    return %c0_i32, %c0_i32_0 : i32, i32
  }
  func.func @transform_6(%arg0: i32) -> (i32, i32) {
    %c0_i32 = arith.constant 0 : i32
    %c0_i32_0 = arith.constant 0 : i32
    %c0_i32_1 = arith.constant 0 : i32
    return %c0_i32, %c0_i32_0 : i32, i32
  }
  func.func @transform_7(%arg0: i32) -> (i32, i32) {
    %c0_i32 = arith.constant 0 : i32
    %c0_i32_0 = arith.constant 0 : i32
    return %c0_i32, %arg0 : i32, i32
  }
}

</mosaic_0001>

<llo_original>
// kernel: tpu_custom_call.1
$region0: #{tpu_custom_call.1}
  #allocation0 [shape = 'u32[]', space=smem, size = 0x4, offset = 0x4, fixed_abs, tag = 'smem constant byte address 0x4 - core index']
  #allocation1 [shape = 'u32[144,128]{1,0:T(1,128)}', space=vmem, size = 0x12000, scoped, tag = 'internal scratch']
  #allocation2 [shape = 'f32[1,1]{1,0:T(1,128)S(1)}', space=vmem, size = 0x200, scoped, tag = 'scoped memory for tpu_custom_call.1']
  %s0 = inlined_call_operand.vmem [shape: f32[8,128], index: 0, kind: input, shape index: {}]
  %s1 = inlined_call_operand.vmem [shape: f32[32,8], index: 1, kind: input, shape index: {}]
  %s2 = inlined_call_operand.vmem [shape: f32[32,1], index: 2, kind: input, shape index: {}]
  %s3 = inlined_call_operand.vmem [shape: f32[16,32], index: 3, kind: input, shape index: {}]
  %s4 = inlined_call_operand.vmem [shape: f32[16,1], index: 4, kind: input, shape index: {}]
  %s5 = inlined_call_operand.vmem [shape: f32[1,16], index: 5, kind: input, shape index: {}]
  %s6 = inlined_call_operand.<no memory space> [shape: f32[1,1], index: 6, kind: input, shape index: {}]
  %s7 = inlined_call_operand.hbm [shape: f32[1,128], index: 7, kind: output, shape index: {}]
  %s8 = sld [smem:[#allocation0]]
  $region38: #{tpu_custom_call.1} parent=0
    _
  %s10 = ssub.s32 1, %s8
  %s11 = scalar_select 0, %s10, %s8
  %v12 = vstv %s6
  %13 = vst [vmem:[#allocation2] sm:$0x1] %v12
  $region1: #{tpu_custom_call.1} parent=0
    #allocation3 [shape = 'u8[512]{0}', space=vmem, size = 0x400, scoped, tag = 'output window, operand 0, single buffered']
    #allocation4 [shape = 's32[1]{0}', space=sflag, size = 0x4, scoped, tag = 'scoped memory for tpu_custom_call.1']
    %14 = vsyncpa [#allocation4], 0
    // Predicated region
    $region2: #{tpu_custom_call.1} parent=1 // pred_check
      _
    $region3: #{tpu_custom_call.1} parent=1 // pred_check_branch
      %16 = sbr.rel (0) target = $region5
    $region4: #{tpu_custom_call.1} parent=1 // pred_region
      _
    $region5: #{tpu_custom_call.1} parent=1 // pred_fallthru
      _
    // Predicated region
    $region6: #{tpu_custom_call.1} parent=1 // pred_check
      _
    $region7: #{tpu_custom_call.1} parent=1 // pred_check_branch
      %18 = sbr.rel (0) target = $region9
    $region8: #{tpu_custom_call.1} parent=1 // pred_region
      _
    $region9: #{tpu_custom_call.1} parent=1 // pred_fallthru
      _
    // Predicated region
    $region10: #{tpu_custom_call.1} parent=1 // pred_check
      _
    $region11: #{tpu_custom_call.1} parent=1 // pred_check_branch
      %20 = sbr.rel (0) target = $region13
    $region12: #{tpu_custom_call.1} parent=1 // pred_region
      _
    $region13: #{tpu_custom_call.1} parent=1 // pred_fallthru
      _
    // Predicated region
    $region14: #{tpu_custom_call.1} parent=1 // pred_check
      _
    $region15: #{tpu_custom_call.1} parent=1 // pred_check_branch
      %22 = sbr.rel (0) target = $region17
    $region16: #{tpu_custom_call.1} parent=1 // pred_region
      _
    $region17: #{tpu_custom_call.1} parent=1 // pred_fallthru
      _
    // Predicated region
    $region18: #{tpu_custom_call.1} parent=1 // pred_check
      _
    $region19: #{tpu_custom_call.1} parent=1 // pred_check_branch
      %24 = sbr.rel (0) target = $region21
    $region20: #{tpu_custom_call.1} parent=1 // pred_region
      _
    $region21: #{tpu_custom_call.1} parent=1 // pred_fallthru
      _
    // Predicated region
    $region22: #{tpu_custom_call.1} parent=1 // pred_check
      _
    $region23: #{tpu_custom_call.1} parent=1 // pred_check_branch
      %26 = sbr.rel (0) target = $region25
    $region24: #{tpu_custom_call.1} parent=1 // pred_region
      _
    $region25: #{tpu_custom_call.1} parent=1 // pred_fallthru
      _
    // Predicated region
    $region26: #{tpu_custom_call.1} parent=1 // pred_check
      _
    $region27: #{tpu_custom_call.1} parent=1 // pred_check_branch
      %28 = sbr.rel (0) target = $region29
    $region28: #{tpu_custom_call.1} parent=1 // pred_region
      _
    $region29: #{tpu_custom_call.1} parent=1 // pred_fallthru
      _
    %v29 = vld [vmem:[%s0] sm:$0xff]
    %v30 = vld [vmem:[%s1] sm:$0xff]
    %v31 = vld [vmem:[%s1 + $0x8] sm:$0xff]
    %v32 = vld [vmem:[%s1 + $0x10] sm:$0xff]
    %v33 = vld [vmem:[%s1 + $0x18] sm:$0xff]
    %v34 = vld [vmem:[%s2] sm:$0xff]
    %v35 = vld [vmem:[%s2 + $0x8] sm:$0xff]
    %v36 = vld [vmem:[%s2 + $0x10] sm:$0xff]
    %v37 = vld [vmem:[%s2 + $0x18] sm:$0xff]
    %39 = vset.pattern.permute.xlu0 0
    %40 = vperm.xlu0 %39, %v34
    %v41 = vpop.permute.xlu0 %40
    %44 = vset.pattern.permute.xlu0 0
    %45 = vperm.xlu0 %44, %v35
    %v46 = vpop.permute.xlu0 %45
    %49 = vset.pattern.permute.xlu0 0
    %50 = vperm.xlu0 %49, %v36
    %v51 = vpop.permute.xlu0 %50
    %54 = vset.pattern.permute.xlu0 0
    %55 = vperm.xlu0 %54, %v37
    %v56 = vpop.permute.xlu0 %55
    %vm58 = vcmask 64512
    %v60 = vsel %vm58, %v30, 0
    %v63 = vsel %vm58, %v31, 0
    %v66 = vsel %vm58, %v32, 0
    %v69 = vsel %vm58, %v33, 0
    %71 = vmatprep.subr.mxu0 0.0
    %72 = vmatpush1.msra.mxu0 %v29
    %73 = vmatprep.subr.mxu0 0.0
    %74 = vmatpush1.msra.mxu0 0.0
    %75 = vmatprep.subr.mxu0 0.0
    %76 = vmatpush1.msra.mxu0 0.0
    %77 = vmatprep.subr.mxu0 0.0
    %78 = vmatpush1.msra.mxu0 0.0
    %79 = vmatprep.subr.mxu0 0.0
    %80 = vmatpush1.msra.mxu0 0.0
    %81 = vmatprep.subr.mxu0 0.0
    %82 = vmatpush1.msra.mxu0 0.0
    %83 = vmatprep.subr.mxu0 0.0
    %84 = vmatpush1.msra.mxu0 0.0
    %85 = vmatprep.subr.mxu0 0.0
    %86 = vmatpush1.msra.mxu0 0.0
    %87 = vmatprep.subr.mxu0 0.0
    %88 = vmatpush1.msra.mxu0 0.0
    %89 = vmatprep.subr.mxu0 0.0
    %90 = vmatpush1.msra.mxu0 0.0
    %91 = vmatprep.subr.mxu0 0.0
    %92 = vmatpush1.msra.mxu0 0.0
    %93 = vmatprep.subr.mxu0 0.0
    %94 = vmatpush1.msra.mxu0 0.0
    %95 = vmatprep.subr.mxu0 0.0
    %96 = vmatpush1.msra.mxu0 0.0
    %97 = vmatprep.subr.mxu0 0.0
    %98 = vmatpush1.msra.mxu0 0.0
    %99 = vmatprep.subr.mxu0 0.0
    %100 = vmatpush1.msra.mxu0 0.0
    %101 = vmatprep.subr.mxu0 0.0
    %102 = vmatpush1.msra.mxu0 0.0
    %103 = vmatprep.subr.mxu0 0.0
    %104 = vmatpush1.msra.mxu0 0.0
    %105 = vmatprep.subr.mxu0 0.0
    %106 = vmatpush1.msra.mxu0 0.0
    %107 = vmatprep.subr.mxu0 0.0
    %108 = vmatpush1.msra.mxu0 0.0
    %109 = vmatprep.subr.mxu0 0.0
    %110 = vmatpush1.msra.mxu0 0.0
    %111 = vmatprep.subr.mxu0 0.0
    %112 = vmatpush1.msra.mxu0 0.0
    %113 = vmatprep.subr.mxu0 0.0
    %114 = vmatpush1.msra.mxu0 0.0
    %115 = vmatprep.subr.mxu0 0.0
    %116 = vmatpush1.msra.mxu0 0.0
    %117 = vmatprep.subr.mxu0 0.0
    %118 = vmatpush1.msra.mxu0 0.0
    %119 = vmatprep.subr.mxu0 0.0
    %120 = vmatpush1.msra.mxu0 0.0
    %121 = vmatprep.subr.mxu0 0.0
    %122 = vmatpush1.msra.mxu0 0.0
    %123 = vmatprep.subr.mxu0 0.0
    %124 = vmatpush1.msra.mxu0 0.0
    %125 = vmatprep.subr.mxu0 0.0
    %126 = vmatpush1.msra.mxu0 0.0
    %127 = vmatprep.subr.mxu0 0.0
    %128 = vmatpush1.msra.mxu0 0.0
    %129 = vmatprep.subr.mxu0 0.0
    %130 = vmatpush1.msra.mxu0 0.0
    %131 = vmatprep.subr.mxu0 0.0
    %132 = vmatpush1.msra.mxu0 0.0
    %133 = vmatprep.subr.mxu0 0.0
    %134 = vmatpush1.msra.mxu0 0.0
    %135 = vmatprep.mubr.f32.mxu0 0.0
    %136 = vmatmul.mubr.f32.gmra.mrb[0].mxu0 %v60
    %v137 = vpop.f32.mrb[0].mxu0
    %v138 = vadd.f32 %v41, %v137
    %v139 = vpop.f32.mrb[0].mxu0
    %140 = vmatprep.mubr.f32.mxu0 0.0
    %141 = vmatmul.mubr.f32.gmra.mrb[0].mxu0 %v63
    %v142 = vpop.f32.mrb[0].mxu0
    %v143 = vadd.f32 %v46, %v142
    %v144 = vpop.f32.mrb[0].mxu0
    %145 = vmatprep.mubr.f32.mxu0 0.0
    %146 = vmatmul.mubr.f32.gmra.mrb[0].mxu0 %v66
    %v147 = vpop.f32.mrb[0].mxu0
    %v148 = vadd.f32 %v51, %v147
    %v149 = vpop.f32.mrb[0].mxu0
    %150 = vmatprep.mubr.f32.mxu0 0.0
    %151 = vmatmul.mubr.f32.gmra.mrb[0].mxu0 %v69
    %v152 = vpop.f32.mrb[0].mxu0
    %v153 = vadd.f32 %v56, %v152
    %v154 = vpop.f32.mrb[0].mxu0
    %155 = vdwg.mxu0
    %v156 = vtanh.pop %v138
    %v157 = vtanh.pop %v143
    %v158 = vtanh.pop %v148
    %v159 = vtanh.pop %v153
    %v160 = vld [vmem:[%s3] sm:$0xff]
    %v161 = vld [vmem:[%s3 + $0x8] sm:$0xff]
    %v162 = vld [vmem:[%s4] sm:$0xff]
    %v163 = vld [vmem:[%s4 + $0x8] sm:$0xff]
    %165 = vset.pattern.permute.xlu0 0
    %166 = vperm.xlu0 %165, %v162
    %v167 = vpop.permute.xlu0 %166
    %170 = vset.pattern.permute.xlu0 0
    %171 = vperm.xlu0 %170, %v163
    %v172 = vpop.permute.xlu0 %171
    %vm174 = vcmask 261120
    %v176 = vsel %vm174, %v160, 0
    %v179 = vsel %vm174, %v161, 0
    %181 = vmatprep.subr.mxu0 0.0
    %182 = vmatpush1.msra.mxu0 %v156
    %183 = vmatprep.subr.mxu0 0.0
    %184 = vmatpush1.msra.mxu0 %v157
    %185 = vmatprep.subr.mxu0 0.0
    %186 = vmatpush1.msra.mxu0 %v158
    %187 = vmatprep.subr.mxu0 0.0
    %188 = vmatpush1.msra.mxu0 %v159
    %189 = vmatprep.subr.mxu0 0.0
    %190 = vmatpush1.msra.mxu0 0.0
    %191 = vmatprep.subr.mxu0 0.0
    %192 = vmatpush1.msra.mxu0 0.0
    %193 = vmatprep.subr.mxu0 0.0
    %194 = vmatpush1.msra.mxu0 0.0
    %195 = vmatprep.subr.mxu0 0.0
    %196 = vmatpush1.msra.mxu0 0.0
    %197 = vmatprep.subr.mxu0 0.0
    %198 = vmatpush1.msra.mxu0 0.0
    %199 = vmatprep.subr.mxu0 0.0
    %200 = vmatpush1.msra.mxu0 0.0
    %201 = vmatprep.subr.mxu0 0.0
    %202 = vmatpush1.msra.mxu0 0.0
    %203 = vmatprep.subr.mxu0 0.0
    %204 = vmatpush1.msra.mxu0 0.0
    %205 = vmatprep.subr.mxu0 0.0
    %206 = vmatpush1.msra.mxu0 0.0
    %207 = vmatprep.subr.mxu0 0.0
    %208 = vmatpush1.msra.mxu0 0.0
    %209 = vmatprep.subr.mxu0 0.0
    %210 = vmatpush1.msra.mxu0 0.0
    %211 = vmatprep.subr.mxu0 0.0
    %212 = vmatpush1.msra.mxu0 0.0
    %213 = vmatprep.subr.mxu0 0.0
    %214 = vmatpush1.msra.mxu0 0.0
    %215 = vmatprep.subr.mxu0 0.0
    %216 = vmatpush1.msra.mxu0 0.0
    %217 = vmatprep.subr.mxu0 0.0
    %218 = vmatpush1.msra.mxu0 0.0
    %219 = vmatprep.subr.mxu0 0.0
    %220 = vmatpush1.msra.mxu0 0.0
    %221 = vmatprep.subr.mxu0 0.0
    %222 = vmatpush1.msra.mxu0 0.0
    %223 = vmatprep.subr.mxu0 0.0
    %224 = vmatpush1.msra.mxu0 0.0
    %225 = vmatprep.subr.mxu0 0.0
    %226 = vmatpush1.msra.mxu0 0.0
    %227 = vmatprep.subr.mxu0 0.0
    %228 = vmatpush1.msra.mxu0 0.0
    %229 = vmatprep.subr.mxu0 0.0
    %230 = vmatpush1.msra.mxu0 0.0
    %231 = vmatprep.subr.mxu0 0.0
    %232 = vmatpush1.msra.mxu0 0.0
    %233 = vmatprep.subr.mxu0 0.0
    %234 = vmatpush1.msra.mxu0 0.0
    %235 = vmatprep.subr.mxu0 0.0
    %236 = vmatpush1.msra.mxu0 0.0
    %237 = vmatprep.subr.mxu0 0.0
    %238 = vmatpush1.msra.mxu0 0.0
    %239 = vmatprep.subr.mxu0 0.0
    %240 = vmatpush1.msra.mxu0 0.0
    %241 = vmatprep.subr.mxu0 0.0
    %242 = vmatpush1.msra.mxu0 0.0
    %243 = vmatprep.subr.mxu0 0.0
    %244 = vmatpush1.msra.mxu0 0.0
    %245 = vmatprep.mubr.f32.mxu0 0.0
    %246 = vmatmul.mubr.f32.gmra.mrb[0].mxu0 %v176
    %v247 = vpop.f32.mrb[0].mxu0
    %v248 = vadd.f32 %v167, %v247
    %v249 = vpop.f32.mrb[0].mxu0
    %250 = vmatprep.mubr.f32.mxu0 0.0
    %251 = vmatmul.mubr.f32.gmra.mrb[0].mxu0 %v179
    %v252 = vpop.f32.mrb[0].mxu0
    %v253 = vadd.f32 %v172, %v252
    %v254 = vpop.f32.mrb[0].mxu0
    %255 = vdwg.mxu0
    %v256 = vtanh.pop %v248
    %v257 = vtanh.pop %v253
    %v258 = vld [vmem:[%s5] sm:$0x1]
    %v259 = vld [vmem:[#allocation2] sm:$0x1]
    %261 = vset.pattern.permute.xlu0 0
    %262 = vperm.xlu0 %261, %v259
    %v263 = vpop.permute.xlu0 %262
    %v265 = vlaneseq
    %v266 = vshrl.u32 %v265, 7
    %v267 = vsub.s32 0, %v266
    %v268 = vrot.slane %v263, %v267
    %vm269 = vcmask 130048
    %v271 = vsel %vm269, %v258, 0
    %273 = vmatprep.subr.mxu0 0.0
    %274 = vmatpush1.msra.mxu0 %v256
    %275 = vmatprep.subr.mxu0 0.0
    %276 = vmatpush1.msra.mxu0 %v257
    %277 = vmatprep.subr.mxu0 0.0
    %278 = vmatpush1.msra.mxu0 0.0
    %279 = vmatprep.subr.mxu0 0.0
    %280 = vmatpush1.msra.mxu0 0.0
    %281 = vmatprep.subr.mxu0 0.0
    %282 = vmatpush1.msra.mxu0 0.0
    %283 = vmatprep.subr.mxu0 0.0
    %284 = vmatpush1.msra.mxu0 0.0
    %285 = vmatprep.subr.mxu0 0.0
    %286 = vmatpush1.msra.mxu0 0.0
    %287 = vmatprep.subr.mxu0 0.0
    %288 = vmatpush1.msra.mxu0 0.0
    %289 = vmatprep.subr.mxu0 0.0
    %290 = vmatpush1.msra.mxu0 0.0
    %291 = vmatprep.subr.mxu0 0.0
    %292 = vmatpush1.msra.mxu0 0.0
    %293 = vmatprep.subr.mxu0 0.0
    %294 = vmatpush1.msra.mxu0 0.0
    %295 = vmatprep.subr.mxu0 0.0
    %296 = vmatpush1.msra.mxu0 0.0
    %297 = vmatprep.subr.mxu0 0.0
    %298 = vmatpush1.msra.mxu0 0.0
    %299 = vmatprep.subr.mxu0 0.0
    %300 = vmatpush1.msra.mxu0 0.0
    %301 = vmatprep.subr.mxu0 0.0
    %302 = vmatpush1.msra.mxu0 0.0
    %303 = vmatprep.subr.mxu0 0.0
    %304 = vmatpush1.msra.mxu0 0.0
    %305 = vmatprep.subr.mxu0 0.0
    %306 = vmatpush1.msra.mxu0 0.0
    %307 = vmatprep.subr.mxu0 0.0
    %308 = vmatpush1.msra.mxu0 0.0
    %309 = vmatprep.subr.mxu0 0.0
    %310 = vmatpush1.msra.mxu0 0.0
    %311 = vmatprep.subr.mxu0 0.0
    %312 = vmatpush1.msra.mxu0 0.0
    %313 = vmatprep.subr.mxu0 0.0
    %314 = vmatpush1.msra.mxu0 0.0
    %315 = vmatprep.subr.mxu0 0.0
    %316 = vmatpush1.msra.mxu0 0.0
    %317 = vmatprep.subr.mxu0 0.0
    %318 = vmatpush1.msra.mxu0 0.0
    %319 = vmatprep.subr.mxu0 0.0
    %320 = vmatpush1.msra.mxu0 0.0
    %321 = vmatprep.subr.mxu0 0.0
    %322 = vmatpush1.msra.mxu0 0.0
    %323 = vmatprep.subr.mxu0 0.0
    %324 = vmatpush1.msra.mxu0 0.0
    %325 = vmatprep.subr.mxu0 0.0
    %326 = vmatpush1.msra.mxu0 0.0
    %327 = vmatprep.subr.mxu0 0.0
    %328 = vmatpush1.msra.mxu0 0.0
    %329 = vmatprep.subr.mxu0 0.0
    %330 = vmatpush1.msra.mxu0 0.0
    %331 = vmatprep.subr.mxu0 0.0
    %332 = vmatpush1.msra.mxu0 0.0
    %333 = vmatprep.subr.mxu0 0.0
    %334 = vmatpush1.msra.mxu0 0.0
    %335 = vmatprep.subr.mxu0 0.0
    %336 = vmatpush1.msra.mxu0 0.0
    %337 = vmatprep.mubr.f32.mxu0 0.0
    %338 = vmatmul.mubr.f32.gmra.mrb[0].mxu0 %v271
    %v339 = vpop.f32.mrb[0].mxu0
    %v340 = vadd.f32 %v268, %v339
    %v341 = vpop.f32.mrb[0].mxu0
    %342 = vdwg.mxu0
    %343 = vst [vmem:[#allocation3] sm:$0x1] %v340
    // Predicated region
    $region30: #{tpu_custom_call.1} parent=1 // pred_check
      _
    $region31: #{tpu_custom_call.1} parent=1 // pred_check_branch
      %345 = sbr.rel (0) target = $region33
    $region32: #{tpu_custom_call.1} parent=1 // pred_region
      %s347 = ssub.s32 16, 16
      %348 = vsyncadd [#allocation4], %s347
      %s350 = sshll.u32 [#allocation3], 4
      %s351 = int_to_ptr.vmem [resolvable:$true] %s350
      %353 = dma.vmem_to_hbm [thread:$0]  %s351, 16, %s7, [#allocation4]
    $region33: #{tpu_custom_call.1} parent=1 // pred_fallthru
      _
    // Predicated region
    $region34: #{tpu_custom_call.1} parent=1 // pred_check
      _
    $region35: #{tpu_custom_call.1} parent=1 // pred_check_branch
      %355 = sbr.rel (0) target = $region37
    $region36: #{tpu_custom_call.1} parent=1 // pred_region
      %356 = dma.done [#allocation4], 16
    $region37: #{tpu_custom_call.1} parent=1 // pred_fallthru
      _
    %357 = vsyncpa [#allocation4], 1

</llo_original>
